<compile_context>
chip_gen: v7x
topology: tpu7x:2x2x1
jax: 0.10.0
libtpu: 0.0.40
codegen_flags: <defaults>
</compile_context>

<pallas_src>
import functools

import jax
import jax.numpy as jnp
from jax.experimental import pallas as pl
from jax.experimental.pallas import tpu as pltpu

M1 = 0.3        # ContrastiveLoss.margin1
M2 = 2.2        # ContrastiveLoss.margin2
DICE_EPS = 1e-6


def _loss_kernel(p0_ref, p1_ref, p2_ref, logit_ref, y_ref, out_ref, *, hw, ragged):
    """Accumulates per-lane partial sums for all loss terms.

    out_ref block (per batch element): (6, TP) float32
      row 0: loss_obj      row 1: loss_bg     row 2: nll (cross-entropy)
      row 3: p_fg * y      row 4: p_fg        row 5: y
    The wrapper sums over (batch, lane) to get the 6 scalars.
    """
    j = pl.program_id(1)

    @pl.when(j == 0)
    def _():
        out_ref[...] = jnp.zeros_like(out_ref)

    y = y_ref[...].astype(jnp.float32)                    # (1, TP)

    # --- ContrastiveLoss on xA = predictions[0]*predictions[2], xB = predictions[1]
    diff = p0_ref[...] * p2_ref[...] - p1_ref[...]        # (C, TP)
    dist = jnp.sqrt(jnp.sum(diff * diff, axis=0, keepdims=True))   # (1, TP)
    mdist_bg = jnp.maximum(dist - M1, 0.0)
    mdist_obj = jnp.maximum(M2 - dist, 0.0)
    loss_bg = mdist_bg * mdist_bg * (1.0 - y)
    loss_obj = mdist_obj * mdist_obj * y

    # --- FocalLoss(gamma=0, alpha=None): 2-class softmax CE, binary stable form.
    #     nll = softplus(d) if y==0 else softplus(-d);  p_fg = sigmoid(d)
    d = logit_ref[1:2, :] - logit_ref[0:1, :]             # (1, TP)
    e = jnp.exp(-jnp.abs(d))                              # exp(-|d|), one EUP exp
    log1pe = jnp.log1p(e)
    nll = jnp.maximum(jnp.where(y > 0.5, -d, d), 0.0) + log1pe
    p_fg = jnp.where(d >= 0, 1.0, e) / (1.0 + e)          # exact sigmoid(d)

    if ragged:
        # Only taken when H*W is not a multiple of the (128-aligned) tile width;
        # the last block then reads past the row end, so mask those lanes.
        tp = y_ref.shape[-1]
        lane = jax.lax.broadcasted_iota(jnp.int32, (1, tp), 1)
        valid = (j * tp + lane) < hw
        zero = jnp.zeros_like(y)
        loss_obj = jnp.where(valid, loss_obj, zero)
        loss_bg = jnp.where(valid, loss_bg, zero)
        nll = jnp.where(valid, nll, zero)
        p_fg = jnp.where(valid, p_fg, zero)
        y = jnp.where(valid, y, zero)

    rows = jnp.concatenate(
        [loss_obj, loss_bg, nll, p_fg * y, p_fg, y], axis=0)   # (6, TP)
    out_ref[...] = out_ref[...] + rows


def _pick_tile_p(hw, cap):
    """Lane-tile width: whole row if it fits, else the largest 128-multiple
    divisor of hw (<= cap), else a 128-multiple with a masked ragged tail."""
    if hw <= cap:
        return hw                       # full-extent block (always legal)
    cap128 = max(128, (cap // 128) * 128)
    for t in range(cap128, 0, -128):
        if hw % t == 0:
            return t
    return cap128                       # ragged tail, masked in kernel


def contra_hybrid_loss_align(predictions, target, *, tile_cap=8192):
    """Returns (obj_loss, bg_loss, bce_loss, loss) exactly like the PyTorch module."""
    p0, p1, p2 = predictions[0], predictions[1], predictions[2]
    logits = predictions[-1]
    n, c, h, w = p0.shape
    assert logits.shape[1] == 2, "final prediction must have 2 class channels"
    hw = h * w

    tile_p = _pick_tile_p(hw, tile_cap)
    n_tiles = pl.cdiv(hw, tile_p)
    ragged = (hw % tile_p) != 0

    f32 = jnp.float32
    # Free, copy-less reshapes (no transpose, no padding).
    p0r = p0.astype(f32).reshape(n, c, hw)
    p1r = p1.astype(f32).reshape(n, c, hw)
    p2r = p2.astype(f32).reshape(n, c, hw)
    lr = logits.astype(f32).reshape(n, 2, hw)
    yr = target.reshape(n, 1, hw)          # int/float; cast to f32 in-kernel

    feat_spec = pl.BlockSpec((pl.Squeezed(), c, tile_p), lambda b, j: (b, 0, j))

    # VMEM (double-buffered inputs): 2*(3c+3)*tile_p*4 B  (~0.5 MiB at c=4,
    # tile_p=8192) -- comfortably inside v7x's 64 MiB, no vmem_limit needed.
    partial = pl.pallas_call(
        functools.partial(_loss_kernel, hw=hw, ragged=ragged),
        out_shape=jax.ShapeDtypeStruct((n, 6, tile_p), f32),
        grid=(n, n_tiles),
        in_specs=[
            feat_spec,
            feat_spec,
            feat_spec,
            pl.BlockSpec((pl.Squeezed(), 2, tile_p), lambda b, j: (b, 0, j)),
            pl.BlockSpec((pl.Squeezed(), 1, tile_p), lambda b, j: (b, 0, j)),
        ],
        out_specs=pl.BlockSpec((pl.Squeezed(), 6, tile_p), lambda b, j: (b, 0, 0)),
        compiler_params=pltpu.CompilerParams(
            # batch axis parallel (megacore on v7x); tile axis carries the
            # per-batch accumulator resident in the output block.
            dimension_semantics=("parallel", "arbitrary")),
    )(p0r, p1r, p2r, lr, yr)

    sums = jnp.sum(partial, axis=(0, 2))   # (6,) tiny final reduction in XLA

    denom = jnp.float32(n * hw)
    obj_loss = sums[0] / denom
    bg_loss = sums[1] / denom
    bce_loss = sums[2] / denom
    dice = 1.0 - (2.0 * sums[3] + DICE_EPS) / (sums[4] + sums[5] + DICE_EPS)
    loss = bce_loss + dice + obj_loss + bg_loss
    return obj_loss, bg_loss, bce_loss, loss


def _reference(predictions, target):
    """Pure-JAX reference of the same forward pass (for numerical check)."""
    p0, p1, p2 = [p.astype(jnp.float32) for p in predictions[:3]]
    logits = predictions[-1].astype(jnp.float32)
    y = target.astype(jnp.float32)

    x_a = p0 * p2
    dist = jnp.sqrt(jnp.sum((x_a - p1) ** 2, axis=1))        # (N,H,W)
    obj = jnp.mean(jnp.maximum(M2 - dist, 0.0) ** 2 * y)
    bg = jnp.mean(jnp.maximum(dist - M1, 0.0) ** 2 * (1.0 - y))

    logp = jax.nn.log_softmax(logits, axis=1)                # (N,2,H,W)
    tgt = target.astype(jnp.int32)[:, None]                  # (N,1,H,W)
    nll = -jnp.take_along_axis(logp, tgt, axis=1)[:, 0]
    bce = jnp.mean(nll)

    p_fg = jax.nn.softmax(logits, axis=1)[:, 1]
    inter = jnp.sum(p_fg * y)
    dice = 1.0 - (2.0 * inter + DICE_EPS) / (jnp.sum(p_fg) + jnp.sum(y) + DICE_EPS)
    return obj, bg, bce, bce + dice + obj + bg


if __name__ == "__main__":
    key = jax.random.PRNGKey(0)
    k0, k1, k2, k3, k4 = jax.random.split(key, 5)

    N, C, H, W = 2, 4, 16, 16
    # predictions[0..2]: feature maps; predictions[3]: 2-class logits.
    predictions = [
        jax.random.normal(k0, (N, C, H, W), jnp.float32),
        jax.random.normal(k1, (N, C, H, W), jnp.float32),
        jax.random.normal(k2, (N, C, H, W), jnp.float32),
        jax.random.normal(k3, (N, 2, H, W), jnp.float32),
    ]
    target = jax.random.bernoulli(k4, 0.5, (N, H, W)).astype(jnp.int32)

    out = jax.block_until_ready(contra_hybrid_loss_align(predictions, target))
    ref = jax.block_until_ready(_reference(predictions, target))

    for got, want in zip(out, ref):
        assert jnp.allclose(got, want, rtol=1e-4, atol=1e-4), (got, want)

    print("KERNEL_OK")
</pallas_src>

<mosaic_0001>
module attributes {stable_mosaic.version = 11 : i64} {
  func.func @_loss_kernel(%arg0: i32, %arg1: i32, %arg2: memref<1x4x256xf32, #tpu.memory_space<vmem>>, %arg3: memref<1x4x256xf32, #tpu.memory_space<vmem>>, %arg4: memref<1x4x256xf32, #tpu.memory_space<vmem>>, %arg5: memref<1x2x256xf32, #tpu.memory_space<vmem>>, %arg6: memref<1x1x256xi32, #tpu.memory_space<vmem>>, %arg7: memref<1x6x256xf32, #tpu.memory_space<vmem>>) attributes {dimension_semantics = [#tpu.dimension_semantics<parallel>, #tpu.dimension_semantics<arbitrary>], iteration_bounds = array<i64: 2, 1>, scalar_prefetch = 0 : i64, scratch_operands = 0 : i64, tpu.core_type = #tpu.core_type<tc>, window_params = [{transform_indices = @transform_0, window_bounds = array<i64: 1, 4, 256>}, {transform_indices = @transform_1, window_bounds = array<i64: 1, 4, 256>}, {transform_indices = @transform_2, window_bounds = array<i64: 1, 4, 256>}, {transform_indices = @transform_3, window_bounds = array<i64: 1, 2, 256>}, {transform_indices = @transform_4, window_bounds = array<i64: 1, 1, 256>}, {transform_indices = @transform_5, window_bounds = array<i64: 1, 6, 256>}]} {
    %c0_i32 = arith.constant 0 : i32
    %0 = arith.cmpi eq, %arg1, %c0_i32 : i32
    %1 = arith.extui %0 : i1 to i32
    %c0_i32_0 = arith.constant 0 : i32
    %2 = arith.cmpi ne, %1, %c0_i32_0 : i32
    scf.if %2 {
      %cst_35 = arith.constant 0.000000e+00 : f32
      %65 = vector.broadcast %cst_35 : f32 to vector<6x256xf32>
      %c0_36 = arith.constant 0 : index
      %c0_37 = arith.constant 0 : index
      %c0_38 = arith.constant 0 : index
      %66 = vector.load %arg7[%c0_36, %c0_37, %c0_38] : memref<1x6x256xf32, #tpu.memory_space<vmem>>, vector<1x6x256xf32>
      %67 = vector.shape_cast %66 : vector<1x6x256xf32> to vector<6x256xf32>
      %68 = vector.shape_cast %65 : vector<6x256xf32> to vector<1x6x256xf32>
      tpu.vector_store %arg7[%c0_36, %c0_37, %c0_38], %68 {strides = array<i32>} : memref<1x6x256xf32, #tpu.memory_space<vmem>>, vector<1x6x256xf32>,
    } else {
    }
    %c0 = arith.constant 0 : index
    %c0_1 = arith.constant 0 : index
    %c0_2 = arith.constant 0 : index
    %3 = vector.load %arg6[%c0, %c0_1, %c0_2] : memref<1x1x256xi32, #tpu.memory_space<vmem>>, vector<1x1x256xi32>
    %4 = vector.shape_cast %3 : vector<1x1x256xi32> to vector<1x256xi32>
    %5 = arith.sitofp %4 : vector<1x256xi32> to vector<1x256xf32>
    %c0_3 = arith.constant 0 : index
    %c0_4 = arith.constant 0 : index
    %c0_5 = arith.constant 0 : index
    %6 = vector.load %arg2[%c0_3, %c0_4, %c0_5] : memref<1x4x256xf32, #tpu.memory_space<vmem>>, vector<1x4x256xf32>
    %7 = vector.shape_cast %6 : vector<1x4x256xf32> to vector<4x256xf32>
    %c0_6 = arith.constant 0 : index
    %c0_7 = arith.constant 0 : index
    %c0_8 = arith.constant 0 : index
    %8 = vector.load %arg4[%c0_6, %c0_7, %c0_8] : memref<1x4x256xf32, #tpu.memory_space<vmem>>, vector<1x4x256xf32>
    %9 = vector.shape_cast %8 : vector<1x4x256xf32> to vector<4x256xf32>
    %10 = arith.mulf %7, %9 : vector<4x256xf32>
    %c0_9 = arith.constant 0 : index
    %c0_10 = arith.constant 0 : index
    %c0_11 = arith.constant 0 : index
    %11 = vector.load %arg3[%c0_9, %c0_10, %c0_11] : memref<1x4x256xf32, #tpu.memory_space<vmem>>, vector<1x4x256xf32>
    %12 = vector.shape_cast %11 : vector<1x4x256xf32> to vector<4x256xf32>
    %13 = arith.subf %10, %12 : vector<4x256xf32>
    %14 = arith.mulf %13, %13 : vector<4x256xf32>
    %cst = arith.constant dense<0.000000e+00> : vector<256xf32>
    %15 = vector.multi_reduction <add>, %14, %cst [0] : vector<4x256xf32> to vector<256xf32>
    %16 = vector.shape_cast %15 : vector<256xf32> to vector<1x256xf32>
    %17 = math.sqrt %16 : vector<1x256xf32>
    %cst_12 = arith.constant 3.000000e-01 : f32
    %18 = vector.broadcast %cst_12 : f32 to vector<1x256xf32>
    %19 = arith.subf %17, %18 : vector<1x256xf32>
    %cst_13 = arith.constant 0.000000e+00 : f32
    %20 = vector.broadcast %cst_13 : f32 to vector<1x256xf32>
    %21 = arith.maximumf %19, %20 : vector<1x256xf32>
    %cst_14 = arith.constant 2.200000e+00 : f32
    %22 = vector.broadcast %cst_14 : f32 to vector<1x256xf32>
    %23 = arith.subf %22, %17 : vector<1x256xf32>
    %cst_15 = arith.constant 0.000000e+00 : f32
    %24 = vector.broadcast %cst_15 : f32 to vector<1x256xf32>
    %25 = arith.maximumf %23, %24 : vector<1x256xf32>
    %26 = arith.mulf %21, %21 : vector<1x256xf32>
    %cst_16 = arith.constant 1.000000e+00 : f32
    %27 = vector.broadcast %cst_16 : f32 to vector<1x256xf32>
    %28 = arith.subf %27, %5 : vector<1x256xf32>
    %29 = arith.mulf %26, %28 : vector<1x256xf32>
    %30 = arith.mulf %25, %25 : vector<1x256xf32>
    %31 = arith.mulf %30, %5 : vector<1x256xf32>
    %c0_17 = arith.constant 0 : index
    %c1 = arith.constant 1 : index
    %c0_18 = arith.constant 0 : index
    %32 = vector.load %arg5[%c0_17, %c1, %c0_18] : memref<1x2x256xf32, #tpu.memory_space<vmem>>, vector<1x1x256xf32>
    %33 = vector.shape_cast %32 : vector<1x1x256xf32> to vector<1x256xf32>
    %c0_19 = arith.constant 0 : index
    %c0_20 = arith.constant 0 : index
    %c0_21 = arith.constant 0 : index
    %34 = vector.load %arg5[%c0_19, %c0_20, %c0_21] : memref<1x2x256xf32, #tpu.memory_space<vmem>>, vector<1x1x256xf32>
    %35 = vector.shape_cast %34 : vector<1x1x256xf32> to vector<1x256xf32>
    %36 = arith.subf %33, %35 : vector<1x256xf32>
    %37 = math.absf %36 : vector<1x256xf32>
    %cst_22 = arith.constant 0.000000e+00 : f32
    %38 = vector.broadcast %cst_22 : f32 to vector<1x256xf32>
    %39 = arith.subf %38, %37 : vector<1x256xf32>
    %40 = math.exp %39 : vector<1x256xf32>
    %41 = math.log1p %40 : vector<1x256xf32>
    %cst_23 = arith.constant 5.000000e-01 : f32
    %42 = vector.broadcast %cst_23 : f32 to vector<1x256xf32>
    %43 = arith.cmpf ogt, %5, %42 : vector<1x256xf32>
    %cst_24 = arith.constant 0.000000e+00 : f32
    %44 = vector.broadcast %cst_24 : f32 to vector<1x256xf32>
    %45 = arith.subf %44, %36 : vector<1x256xf32>
    %46 = arith.select %43, %45, %36 : vector<1x256xi1>, vector<1x256xf32>
    %cst_25 = arith.constant 0.000000e+00 : f32
    %47 = vector.broadcast %cst_25 : f32 to vector<1x256xf32>
    %48 = arith.maximumf %46, %47 : vector<1x256xf32>
    %49 = arith.addf %48, %41 : vector<1x256xf32>
    %cst_26 = arith.constant 0.000000e+00 : f32
    %50 = vector.broadcast %cst_26 : f32 to vector<1x256xf32>
    %51 = arith.cmpf oge, %36, %50 : vector<1x256xf32>
    %cst_27 = arith.constant 1.000000e+00 : f32
    %52 = vector.broadcast %cst_27 : f32 to vector<1x256xf32>
    %53 = arith.select %51, %52, %40 : vector<1x256xi1>, vector<1x256xf32>
    %cst_28 = arith.constant 1.000000e+00 : f32
    %54 = vector.broadcast %cst_28 : f32 to vector<1x256xf32>
    %55 = arith.addf %54, %40 : vector<1x256xf32>
    %56 = arith.divf %53, %55 : vector<1x256xf32>
    %57 = arith.mulf %56, %5 : vector<1x256xf32>
    %58 = tpu.concatenate %31, %29, %49, %57, %56, %5 in 0 : vector<1x256xf32>, vector<1x256xf32>, vector<1x256xf32>, vector<1x256xf32>, vector<1x256xf32>, vector<1x256xf32> -> vector<6x256xf32>
    %c0_29 = arith.constant 0 : index
    %c0_30 = arith.constant 0 : index
    %c0_31 = arith.constant 0 : index
    %59 = vector.load %arg7[%c0_29, %c0_30, %c0_31] : memref<1x6x256xf32, #tpu.memory_space<vmem>>, vector<1x6x256xf32>
    %60 = vector.shape_cast %59 : vector<1x6x256xf32> to vector<6x256xf32>
    %61 = arith.addf %60, %58 : vector<6x256xf32>
    %c0_32 = arith.constant 0 : index
    %c0_33 = arith.constant 0 : index
    %c0_34 = arith.constant 0 : index
    %62 = vector.load %arg7[%c0_32, %c0_33, %c0_34] : memref<1x6x256xf32, #tpu.memory_space<vmem>>, vector<1x6x256xf32>
    %63 = vector.shape_cast %62 : vector<1x6x256xf32> to vector<6x256xf32>
    %64 = vector.shape_cast %61 : vector<6x256xf32> to vector<1x6x256xf32>
    tpu.vector_store %arg7[%c0_32, %c0_33, %c0_34], %64 {strides = array<i32>} : memref<1x6x256xf32, #tpu.memory_space<vmem>>, vector<1x6x256xf32>,
    return
  }
  func.func @transform_0(%arg0: i32, %arg1: i32) -> (i32, i32, i32) {
    %c0_i32 = arith.constant 0 : i32
    %c0_i32_0 = arith.constant 0 : i32
    return %arg0, %c0_i32, %arg1 : i32, i32, i32
  }
  func.func @transform_1(%arg0: i32, %arg1: i32) -> (i32, i32, i32) {
    %c0_i32 = arith.constant 0 : i32
    %c0_i32_0 = arith.constant 0 : i32
    return %arg0, %c0_i32, %arg1 : i32, i32, i32
  }
  func.func @transform_2(%arg0: i32, %arg1: i32) -> (i32, i32, i32) {
    %c0_i32 = arith.constant 0 : i32
    %c0_i32_0 = arith.constant 0 : i32
    return %arg0, %c0_i32, %arg1 : i32, i32, i32
  }
  func.func @transform_3(%arg0: i32, %arg1: i32) -> (i32, i32, i32) {
    %c0_i32 = arith.constant 0 : i32
    %c0_i32_0 = arith.constant 0 : i32
    return %arg0, %c0_i32, %arg1 : i32, i32, i32
  }
  func.func @transform_4(%arg0: i32, %arg1: i32) -> (i32, i32, i32) {
    %c0_i32 = arith.constant 0 : i32
    %c0_i32_0 = arith.constant 0 : i32
    return %arg0, %c0_i32, %arg1 : i32, i32, i32
  }
  func.func @transform_5(%arg0: i32, %arg1: i32) -> (i32, i32, i32) {
    %c0_i32 = arith.constant 0 : i32
    %c0_i32_0 = arith.constant 0 : i32
    %c0_i32_1 = arith.constant 0 : i32
    return %arg0, %c0_i32, %c0_i32_0 : i32, i32, i32
  }
}

</mosaic_0001>

<llo_original>
// kernel: tpu_custom_call.1
$region0: #{tpu_custom_call.1}
  #allocation0 [shape = 'u32[]', space=smem, size = 0x4, offset = 0x4, fixed_abs, tag = 'smem constant byte address 0x4 - core index']
  #allocation1 [shape = 'u32[144,128]{1,0:T(1,128)}', space=vmem, size = 0x12000, scoped, tag = 'internal scratch']
  %s0 = inlined_call_operand.hbm [shape: f32[2,4,256], index: 0, kind: input, shape index: {}]
  %s1 = inlined_call_operand.hbm [shape: f32[2,4,256], index: 1, kind: input, shape index: {}]
  %s2 = inlined_call_operand.hbm [shape: f32[2,4,256], index: 2, kind: input, shape index: {}]
  %s3 = inlined_call_operand.vmem [shape: f32[2,2,256], index: 3, kind: input, shape index: {}]
  %s4 = inlined_call_operand.vmem [shape: s32[2,1,256], index: 4, kind: input, shape index: {}]
  %s5 = inlined_call_operand.vmem [shape: f32[2,6,256], index: 5, kind: output, shape index: {}]
  %s6 = sld [smem:[#allocation0]]
  $region69: #{tpu_custom_call.1} parent=0
    _
  %s8 = ssub.s32 1, %s6
  %s9 = scalar_select 0, %s8, %s6
  $region1: #{tpu_custom_call.1} parent=0
    #allocation2 [shape = 'u8[8192]{0}', space=vmem, size = 0x2000, scoped, tag = 'input window, operand 0']
    #allocation3 [shape = 's32[2]{0}', space=sflag, size = 0x8, scoped, tag = 'scoped memory for tpu_custom_call.1']
    #allocation4 [shape = 'u8[8192]{0}', space=vmem, size = 0x2000, scoped, tag = 'input window, operand 1']
    #allocation5 [shape = 's32[2]{0}', space=sflag, size = 0x8, scoped, tag = 'scoped memory for tpu_custom_call.1']
    #allocation6 [shape = 'u8[8192]{0}', space=vmem, size = 0x2000, scoped, tag = 'input window, operand 2']
    %10 = vsyncpa [#allocation3], 0
    %s11 = scalar_lea.sflag [#allocation3], 1
    %12 = vsyncpa %s11, 0
    %13 = vsyncpa [#allocation5], 0
    %s14 = scalar_lea.sflag [#allocation5], 1
    %15 = vsyncpa %s14, 0
    loop: start=0, step=1, limit=4
    $region2: #{tpu_custom_call.1} parent=1 // loop_pre_header
      _
    $region3: #{tpu_custom_call.1} parent=1 // loop_header
      %s17 = sphi 0, %s21
      %p18 = scmp.ge.s32.totalorder %s17, 4
      %s24 = sphi 0, %s36
      %s25 = sphi 0, %s32
      %s26 = sphi 0, %s24
      %s27 = sphi 0, %s25
      %s28 = sphi 0, %s26
      %s29 = sphi 0, %s27
      %s41 = sphi 0, %s43
      %s44 = sphi 0, %s41
      %s45 = sphi 0, %s44
      %s61 = sphi 0, %s45
      %s69 = sphi 0, %s71
      %s72 = sphi 0, %s69
      %s73 = sphi 0, %s72
      %s89 = sphi 0, %s73
      %s97 = sphi 0, %s99
      %s100 = sphi 0, %s97
      %s101 = sphi 0, %s100
      %s117 = sphi 0, %s101
      %s125 = sphi 0, %s127
      %s128 = sphi 0, %s125
      %s129 = sphi 0, %s128
      %s145 = sphi 0, %s129
      %s153 = sphi 0, %s155
      %s156 = sphi 0, %s153
      %s157 = sphi 0, %s156
      %s173 = sphi 0, %s157
      %s179 = sphi 0, %s181
      %s182 = sphi 0, %s179
      %s183 = sphi 0, %s182
      %s199 = sphi 0, %s183
    $region4: #{tpu_custom_call.1} parent=1 // loop_header_branch
      %20 = sbr.rel (%p18) target = $region8
    $region5: #{tpu_custom_call.1} parent=1 // loop_body
      %s22 = ssub.s32 %s17, 1
      %s23 = ssub.s32 %s17, 2
      %s30 = sadd.s32 1, %s25
      %p31 = scmp.ge.s32.totalorder %s30, 1
      %s32 = scalar_select %p31, 0, %s30
      %s33 = sadd.s32 1, %s24
      %s34 = scalar_select %p31, %s33, %s24
      %p35 = scmp.ge.s32.totalorder %s34, 2
      %s36 = scalar_select %p35, 0, %s34
      %s37 = ssub.s32 %s24, %s36
      %s38 = ssub.s32 %s25, %s32
      %s39 = sor.u32 %s37, %s38
      %p40 = scmp.eq.s32.totalorder %s39, 0
      %s42 = sadd.s32 %s41, 1
      %s43 = scalar_select %p40, %s41, %s42
      %p46 = pneg %p40
      %p47 = scmp.eq.s32.totalorder %s17, 1
      %p48 = por %p46, %p47
      %p49 = scmp.ne.s32.totalorder %s41, %s44
      %p50 = scmp.eq.s32.totalorder %s17, 0
      %p51 = por %p49, %p50
      %p52 = scmp.ne.s32.totalorder %s41, %s44
      %p53 = scmp.eq.s32.totalorder %s22, 1
      %p54 = por %p52, %p53
      %p55 = scmp.ne.s32.totalorder %s44, %s45
      %p56 = scmp.eq.s32.totalorder %s22, 0
      %p57 = por %p55, %p56
      %p58 = scmp.ne.s32.totalorder %s44, %s45
      %p59 = scmp.eq.s32.totalorder %s23, 1
      %p60 = por %p58, %p59
      %p62 = scmp.ne.s32.totalorder %s45, %s61
      %p63 = scmp.eq.s32.totalorder %s23, 0
      %p64 = por %p62, %p63
      %s65 = ssub.s32 %s24, %s36
      %s66 = ssub.s32 %s25, %s32
      %s67 = sor.u32 %s65, %s66
      %p68 = scmp.eq.s32.totalorder %s67, 0
      %s70 = sadd.s32 %s69, 1
      %s71 = scalar_select %p68, %s69, %s70
      %p74 = pneg %p68
      %p75 = scmp.eq.s32.totalorder %s17, 1
      %p76 = por %p74, %p75
      %p77 = scmp.ne.s32.totalorder %s69, %s72
      %p78 = scmp.eq.s32.totalorder %s17, 0
      %p79 = por %p77, %p78
      %p80 = scmp.ne.s32.totalorder %s69, %s72
      %p81 = scmp.eq.s32.totalorder %s22, 1
      %p82 = por %p80, %p81
      %p83 = scmp.ne.s32.totalorder %s72, %s73
      %p84 = scmp.eq.s32.totalorder %s22, 0
      %p85 = por %p83, %p84
      %p86 = scmp.ne.s32.totalorder %s72, %s73
      %p87 = scmp.eq.s32.totalorder %s23, 1
      %p88 = por %p86, %p87
      %p90 = scmp.ne.s32.totalorder %s73, %s89
      %p91 = scmp.eq.s32.totalorder %s23, 0
      %p92 = por %p90, %p91
      %s93 = ssub.s32 %s24, %s36
      %s94 = ssub.s32 %s25, %s32
      %s95 = sor.u32 %s93, %s94
      %p96 = scmp.eq.s32.totalorder %s95, 0
      %s98 = sadd.s32 %s97, 1
      %s99 = scalar_select %p96, %s97, %s98
      %p102 = pneg %p96
      %p103 = scmp.eq.s32.totalorder %s17, 1
      %p104 = por %p102, %p103
      %p105 = scmp.ne.s32.totalorder %s97, %s100
      %p106 = scmp.eq.s32.totalorder %s17, 0
      %p107 = por %p105, %p106
      %p108 = scmp.ne.s32.totalorder %s97, %s100
      %p109 = scmp.eq.s32.totalorder %s22, 1
      %p110 = por %p108, %p109
      %p111 = scmp.ne.s32.totalorder %s100, %s101
      %p112 = scmp.eq.s32.totalorder %s22, 0
      %p113 = por %p111, %p112
      %p114 = scmp.ne.s32.totalorder %s100, %s101
      %p115 = scmp.eq.s32.totalorder %s23, 1
      %p116 = por %p114, %p115
      %p118 = scmp.ne.s32.totalorder %s101, %s117
      %p119 = scmp.eq.s32.totalorder %s23, 0
      %p120 = por %p118, %p119
      %s121 = ssub.s32 %s24, %s36
      %s122 = ssub.s32 %s25, %s32
      %s123 = sor.u32 %s121, %s122
      %p124 = scmp.eq.s32.totalorder %s123, 0
      %s126 = sadd.s32 %s125, 1
      %s127 = scalar_select %p124, %s125, %s126
      %p130 = pneg %p124
      %p131 = scmp.eq.s32.totalorder %s17, 1
      %p132 = por %p130, %p131
      %p133 = scmp.ne.s32.totalorder %s125, %s128
      %p134 = scmp.eq.s32.totalorder %s17, 0
      %p135 = por %p133, %p134
      %p136 = scmp.ne.s32.totalorder %s125, %s128
      %p137 = scmp.eq.s32.totalorder %s22, 1
      %p138 = por %p136, %p137
      %p139 = scmp.ne.s32.totalorder %s128, %s129
      %p140 = scmp.eq.s32.totalorder %s22, 0
      %p141 = por %p139, %p140
      %p142 = scmp.ne.s32.totalorder %s128, %s129
      %p143 = scmp.eq.s32.totalorder %s23, 1
      %p144 = por %p142, %p143
      %p146 = scmp.ne.s32.totalorder %s129, %s145
      %p147 = scmp.eq.s32.totalorder %s23, 0
      %p148 = por %p146, %p147
      %s149 = ssub.s32 %s24, %s36
      %s150 = ssub.s32 %s25, %s32
      %s151 = sor.u32 %s149, %s150
      %p152 = scmp.eq.s32.totalorder %s151, 0
      %s154 = sadd.s32 %s153, 1
      %s155 = scalar_select %p152, %s153, %s154
      %p158 = pneg %p152
      %p159 = scmp.eq.s32.totalorder %s17, 1
      %p160 = por %p158, %p159
      %p161 = scmp.ne.s32.totalorder %s153, %s156
      %p162 = scmp.eq.s32.totalorder %s17, 0
      %p163 = por %p161, %p162
      %p164 = scmp.ne.s32.totalorder %s153, %s156
      %p165 = scmp.eq.s32.totalorder %s22, 1
      %p166 = por %p164, %p165
      %p167 = scmp.ne.s32.totalorder %s156, %s157
      %p168 = scmp.eq.s32.totalorder %s22, 0
      %p169 = por %p167, %p168
      %p170 = scmp.ne.s32.totalorder %s156, %s157
      %p171 = scmp.eq.s32.totalorder %s23, 1
      %p172 = por %p170, %p171
      %p174 = scmp.ne.s32.totalorder %s157, %s173
      %p175 = scmp.eq.s32.totalorder %s23, 0
      %p176 = por %p174, %p175
      %s177 = ssub.s32 %s24, %s36
      %p178 = scmp.eq.s32.totalorder %s177, 0
      %s180 = sadd.s32 %s179, 1
      %s181 = scalar_select %p178, %s179, %s180
      %p184 = pneg %p178
      %p185 = scmp.eq.s32.totalorder %s17, 1
      %p186 = por %p184, %p185
      %p187 = scmp.ne.s32.totalorder %s179, %s182
      %p188 = scmp.eq.s32.totalorder %s17, 0
      %p189 = por %p187, %p188
      %p190 = scmp.ne.s32.totalorder %s179, %s182
      %p191 = scmp.eq.s32.totalorder %s22, 1
      %p192 = por %p190, %p191
      %p193 = scmp.ne.s32.totalorder %s182, %s183
      %p194 = scmp.eq.s32.totalorder %s22, 0
      %p195 = por %p193, %p194
      %p196 = scmp.ne.s32.totalorder %s182, %s183
      %p197 = scmp.eq.s32.totalorder %s23, 1
      %p198 = por %p196, %p197
      %p200 = scmp.ne.s32.totalorder %s183, %s199
      %p201 = scmp.eq.s32.totalorder %s23, 0
      %p202 = por %p200, %p201
      %p203 = scmp.le.s32.totalorder 1, %s17
      %p204 = scmp.lt.s32.totalorder %s17, 3
      %p205 = pnand %p203, %p204
      %p206 = pneg %p205
      // Predicated region
      $region9: #{tpu_custom_call.1} parent=5 // pred_check
        _
      $region10: #{tpu_custom_call.1} parent=5 // pred_check_branch
        %208 = sbr.rel (%p205) target = $region12
      $region11: #{tpu_custom_call.1} parent=5 // pred_region
        %s209 = ssub.s32 %s17, 1
      $region12: #{tpu_custom_call.1} parent=5 // pred_fallthru
        _
      %p210 = scmp.lt.s32.totalorder %s17, 2
      // Predicated region
      $region13: #{tpu_custom_call.1} parent=5 // pred_check
        %p211 = pneg %p210
      $region14: #{tpu_custom_call.1} parent=5 // pred_check_branch
        %213 = sbr.rel (%p211) target = $region16
      $region15: #{tpu_custom_call.1} parent=5 // pred_region
        // Predicated region
        $region17: #{tpu_custom_call.1} parent=15 // pred_check
          %p214 = pneg %p51
        $region18: #{tpu_custom_call.1} parent=15 // pred_check_branch
          %216 = sbr.rel (%p214) target = $region20
        $region19: #{tpu_custom_call.1} parent=15 // pred_region
          %s217 = sand.u32 %s41, 1
          %s218 = scalar_lea.sflag [#allocation3], %s217
          %s219 = sand.u32 %s41, 1
          %s220 = smul.addr %s219, 8
          %s221 = scalar_lea.vmem [#allocation2], %s220
          %s222 = smul.u32 2, %s25
          %s224 = ssub.s32 128, 128
          %225 = vsyncadd %s218, %s224
          %s226 = smul.addr %s24, 2
          %s227 = sadd.s32 %s222, %s226
          %s228 = smul.addr %s227, 64
          %s229 = scalar_lea.hbm %s0, %s228
          %s231 = sshll.u32 %s221, 4
          %s232 = int_to_ptr.vmem [resolvable:$true] %s231
          %234 = dma.hbm_to_vmem [thread:$0]  %s229, 128, %s232, %s218
        $region20: #{tpu_custom_call.1} parent=15 // pred_fallthru
          _
        // Predicated region
        $region21: #{tpu_custom_call.1} parent=15 // pred_check
          %p235 = pneg %p79
        $region22: #{tpu_custom_call.1} parent=15 // pred_check_branch
          %237 = sbr.rel (%p235) target = $region24
        $region23: #{tpu_custom_call.1} parent=15 // pred_region
          %s238 = sand.u32 %s17, 1
          %s239 = scalar_lea.sflag [#allocation5], %s238
          %s240 = sand.u32 %s69, 1
          %s241 = smul.addr %s240, 8
          %s242 = scalar_lea.vmem [#allocation4], %s241
          %s243 = smul.u32 2, %s25
          %s245 = ssub.s32 128, 128
          %246 = vsyncadd %s239, %s245
          %s247 = smul.addr %s24, 2
          %s248 = sadd.s32 %s243, %s247
          %s249 = smul.addr %s248, 64
          %s250 = scalar_lea.hbm %s1, %s249
          %s252 = sshll.u32 %s242, 4
          %s253 = int_to_ptr.vmem [resolvable:$true] %s252
          %255 = dma.hbm_to_vmem [thread:$0]  %s250, 128, %s253, %s239
        $region24: #{tpu_custom_call.1} parent=15 // pred_fallthru
          _
        // Predicated region
        $region25: #{tpu_custom_call.1} parent=15 // pred_check
          %p256 = pneg %p107
        $region26: #{tpu_custom_call.1} parent=15 // pred_check_branch
          %258 = sbr.rel (%p256) target = $region28
        $region27: #{tpu_custom_call.1} parent=15 // pred_region
          %s259 = sand.u32 %s17, 1
          %s260 = scalar_lea.sflag [#allocation5], %s259
          %s261 = sand.u32 %s97, 1
          %s262 = smul.addr %s261, 8
          %s263 = scalar_lea.vmem [#allocation6], %s262
          %s264 = smul.u32 2, %s25
          %s266 = ssub.s32 128, 128
          %267 = vsyncadd %s260, %s266
          %s268 = smul.addr %s24, 2
          %s269 = sadd.s32 %s264, %s268
          %s270 = smul.addr %s269, 64
          %s271 = scalar_lea.hbm %s2, %s270
          %s273 = sshll.u32 %s263, 4
          %s274 = int_to_ptr.vmem [resolvable:$true] %s273
          %276 = dma.hbm_to_vmem [thread:$0]  %s271, 128, %s274, %s260
        $region28: #{tpu_custom_call.1} parent=15 // pred_fallthru
          _
        // Predicated region
        $region29: #{tpu_custom_call.1} parent=15 // pred_check
          %p277 = pneg %p135
        $region30: #{tpu_custom_call.1} parent=15 // pred_check_branch
          %279 = sbr.rel (%p277) target = $region32
        $region31: #{tpu_custom_call.1} parent=15 // pred_region
          %s280 = smul.u32 2, %s25
          %p281 = scmp.lt.s32.totalorder %s24, 1
          %s282 = scalar_select %p281, %s24, 1
          %p283 = scmp.lt.s32.totalorder %s280, 1
          %s284 = scalar_select %p283, %s280, 1
          %s285 = smul.addr %s282, 2
          %s286 = sadd.s32 %s284, %s285
          %s287 = smul.addr %s286, 2
          %s288 = scalar_lea.vmem %s3, %s287
          %s289 = smul.u32 2, %s25
        $region32: #{tpu_custom_call.1} parent=15 // pred_fallthru
          _
        // Predicated region
        $region33: #{tpu_custom_call.1} parent=15 // pred_check
          %p290 = pneg %p163
        $region34: #{tpu_custom_call.1} parent=15 // pred_check_branch
          %292 = sbr.rel (%p290) target = $region36
        $region35: #{tpu_custom_call.1} parent=15 // pred_region
          %s293 = smul.u32 2, %s25
          %p294 = scmp.lt.s32.totalorder %s24, 1
          %s295 = scalar_select %p294, %s24, 1
          %p296 = scmp.lt.s32.totalorder %s293, 1
          %s297 = scalar_select %p296, %s293, 1
          %s298 = smul.addr %s295, 2
          %s299 = sadd.s32 %s297, %s298
          %s300 = scalar_lea.vmem %s4, %s299
          %s301 = smul.u32 2, %s25
        $region36: #{tpu_custom_call.1} parent=15 // pred_fallthru
          _
      $region16: #{tpu_custom_call.1} parent=5 // pred_fallthru
        _
      %p302 = scmp.le.s32.totalorder 1, %s17
      %p303 = scmp.lt.s32.totalorder %s17, 3
      %p304 = pnand %p302, %p303
      %p305 = pneg %p304
      // Predicated region
      $region37: #{tpu_custom_call.1} parent=5 // pred_check
        _
      $region38: #{tpu_custom_call.1} parent=5 // pred_check_branch
        %307 = sbr.rel (%p304) target = $region40
      $region39: #{tpu_custom_call.1} parent=5 // pred_region
        %s308 = ssub.s32 %s17, 1
        %s309 = sand.u32 %s44, 1
        %s310 = scalar_lea.sflag [#allocation3], %s309
        %s311 = sand.u32 %s44, 1
        %s312 = smul.addr %s311, 8
        %s313 = scalar_lea.vmem [#allocation2], %s312
        // Predicated region
        $region41: #{tpu_custom_call.1} parent=39 // pred_check
          %p314 = pneg %p57
        $region42: #{tpu_custom_call.1} parent=39 // pred_check_branch
          %316 = sbr.rel (%p314) target = $region44
        $region43: #{tpu_custom_call.1} parent=39 // pred_region
          %317 = dma.done %s310, 128
        $region44: #{tpu_custom_call.1} parent=39 // pred_fallthru
          _
        %s318 = sand.u32 %s22, 1
        %s319 = scalar_lea.sflag [#allocation5], %s318
        %s320 = sand.u32 %s72, 1
        %s321 = smul.addr %s320, 8
        %s322 = scalar_lea.vmem [#allocation4], %s321
        // Predicated region
        $region45: #{tpu_custom_call.1} parent=39 // pred_check
          %p323 = pneg %p85
        $region46: #{tpu_custom_call.1} parent=39 // pred_check_branch
          %325 = sbr.rel (%p323) target = $region48
        $region47: #{tpu_custom_call.1} parent=39 // pred_region
          %326 = dma.done %s319, 128
        $region48: #{tpu_custom_call.1} parent=39 // pred_fallthru
          _
        %s327 = sand.u32 %s22, 1
        %s328 = scalar_lea.sflag [#allocation5], %s327
        %s329 = sand.u32 %s100, 1
        %s330 = smul.addr %s329, 8
        %s331 = scalar_lea.vmem [#allocation6], %s330
        // Predicated region
        $region49: #{tpu_custom_call.1} parent=39 // pred_check
          %p332 = pneg %p113
        $region50: #{tpu_custom_call.1} parent=39 // pred_check_branch
          %334 = sbr.rel (%p332) target = $region52
        $region51: #{tpu_custom_call.1} parent=39 // pred_region
          %335 = dma.done %s328, 128
        $region52: #{tpu_custom_call.1} parent=39 // pred_fallthru
          _
        %s336 = sand.u32 %s44, 1
        %s337 = scalar_lea.sflag [#allocation3], %s336
        %s338 = sand.u32 %s44, 1
        %s339 = smul.addr %s338, 8
        %s340 = scalar_lea.vmem [#allocation2], %s339
        %p341 = pneg %p57
        %p342 = pneg %p54
        %s343 = sand.u32 %s22, 1
        %s344 = scalar_lea.sflag [#allocation5], %s343
        %s345 = sand.u32 %s72, 1
        %s346 = smul.addr %s345, 8
        %s347 = scalar_lea.vmem [#allocation4], %s346
        %p348 = pneg %p85
        %p349 = pneg %p82
        %s350 = sand.u32 %s22, 1
        %s351 = scalar_lea.sflag [#allocation5], %s350
        %s352 = sand.u32 %s100, 1
        %s353 = smul.addr %s352, 8
        %s354 = scalar_lea.vmem [#allocation6], %s353
        %p355 = pneg %p113
        %p356 = pneg %p110
        %s357 = smul.u32 2, %s27
        %p358 = scmp.lt.s32.totalorder %s26, 1
        %s359 = scalar_select %p358, %s26, 1
        %p360 = scmp.lt.s32.totalorder %s357, 1
        %s361 = scalar_select %p360, %s357, 1
        %s362 = smul.addr %s359, 2
        %s363 = sadd.s32 %s361, %s362
        %s364 = smul.addr %s363, 2
        %s365 = scalar_lea.vmem %s3, %s364
        %p366 = pneg %p141
        %p367 = pneg %p138
        %s368 = smul.u32 2, %s27
        %p369 = scmp.lt.s32.totalorder %s26, 1
        %s370 = scalar_select %p369, %s26, 1
        %p371 = scmp.lt.s32.totalorder %s368, 1
        %s372 = scalar_select %p371, %s368, 1
        %s373 = smul.addr %s370, 2
        %s374 = sadd.s32 %s372, %s373
        %s375 = scalar_lea.vmem %s4, %s374
        %p376 = pneg %p169
        %p377 = pneg %p166
        %p378 = pneg %p195
        %p379 = pneg %p192
        %p380 = scmp.lt.s32.totalorder %s26, 1
        %s381 = scalar_select %p380, %s26, 1
        %s382 = smul.addr %s381, 2
        %s383 = smul.addr %s382, 8
        %s384 = scalar_lea.vmem %s5, %s383
        %s385 = smul.u32 2, %s27
        %s386 = smul.u32 2, %s27
        %s387 = smul.u32 2, %s27
        %s388 = smul.u32 2, %s27
        %p389 = scmp.lt.s32.totalorder %s26, 1
        %s390 = scalar_select %p389, %s26, 1
        %p391 = scmp.lt.s32.totalorder %s388, 1
        %s392 = scalar_select %p391, %s388, 1
        %s393 = smul.addr %s390, 2
        %s394 = sadd.s32 %s392, %s393
        %s395 = smul.addr %s394, 2
        %s396 = scalar_lea.vmem %s3, %s395
        %s397 = smul.u32 2, %s27
        %s398 = smul.u32 2, %s27
        %p399 = scmp.lt.s32.totalorder %s26, 1
        %s400 = scalar_select %p399, %s26, 1
        %p401 = scmp.lt.s32.totalorder %s398, 1
        %s402 = scalar_select %p401, %s398, 1
        %s403 = smul.addr %s400, 2
        %s404 = sadd.s32 %s402, %s403
        %s405 = scalar_lea.vmem %s4, %s404
        %s406 = smul.u32 2, %s27
        %p407 = scmp.lt.s32.totalorder %s26, 1
        %s408 = scalar_select %p407, %s26, 1
        %s409 = smul.addr %s408, 2
        %s410 = smul.addr %s409, 8
        %s411 = scalar_lea.vmem %s5, %s410
        %p412 = scmp.eq.s32.totalorder %s27, 0
        // Predicated region
        $region53: #{tpu_custom_call.1} parent=39 // pred_check
          %p413 = pneg %p412
        $region54: #{tpu_custom_call.1} parent=39 // pred_check_branch
          %415 = sbr.rel (%p413) target = $region56
        $region55: #{tpu_custom_call.1} parent=39 // pred_region
          %416 = vst [vmem:[%s411] sm:$0x3f] 0.0
          %417 = vst [vmem:[%s411 + $0x8] sm:$0x3f] 0.0
        $region56: #{tpu_custom_call.1} parent=39 // pred_fallthru
          _
        %v418 = vld [vmem:[%s405] sm:$0x3]
        %v419 = vcvt.s32.f32 %v418
        %v420 = vld [vmem:[%s313] sm:$0xff]
        %v421 = vld [vmem:[%s331] sm:$0xff]
        %v422 = vmul.f32 %v420, %v421
        %v423 = vld [vmem:[%s322] sm:$0xff]
        %v424 = vsub.f32 %v422, %v423
        %v425 = vmul.f32 %v424, %v424
        %v427 = vcombine.high %v425, %v425
        %vm429 = vcmask 1043456
        %v430 = vsel %vm429, %v425, 0.0
        %v431 = vrot.slane %v430, 4
        %v432 = vadd.f32 %v430, %v431
        %v433 = vrot.slane %v432, 2
        %v434 = vadd.f32 %v432, %v433
        %v435 = vrot.slane %v434, 1
        %v436 = vadd.f32 %v434, %v435
        %v437 = vsel %vm429, %v427, 0.0
        %v438 = vrot.slane %v437, 4
        %v439 = vadd.f32 %v437, %v438
        %v440 = vrot.slane %v439, 2
        %v441 = vadd.f32 %v439, %v440
        %v442 = vrot.slane %v441, 1
        %v443 = vadd.f32 %v441, %v442
        %v444 = vrsqrt.pop %v436
        %v445 = vmul.f32 %v436, %v444
        %vm446 = vcmp.eq.f32.partialorder %v436, inf
        %v447 = vsel %vm446, %v436, %v445
        %vm448 = vcmp.eq.f32.partialorder %v436, 0.0
        %v449 = vand.u32 %v436, 2147483648
        %v450 = vsel %vm448, %v449, %v447
        %v451 = vrsqrt.pop %v443
        %v452 = vmul.f32 %v443, %v451
        %vm453 = vcmp.eq.f32.partialorder %v443, inf
        %v454 = vsel %vm453, %v443, %v452
        %vm455 = vcmp.eq.f32.partialorder %v443, 0.0
        %v456 = vand.u32 %v443, 2147483648
        %v457 = vsel %vm455, %v456, %v454
        %v458 = vsub.f32 %v450, 0.3
        %v459 = vsub.f32 %v457, 0.3
        %v460 = vmax.f32 %v458, 0.0
        %v461 = vmax.f32 %v459, 0.0
        %v462 = vsub.f32 2.2, %v450
        %v463 = vsub.f32 2.2, %v457
        %v464 = vmax.f32 %v462, 0.0
        %v465 = vmax.f32 %v463, 0.0
        %v466 = vmul.f32 %v460, %v460
        %v467 = vmul.f32 %v461, %v461
        %v468 = vsub.f32 1.0, %v419
        %v470 = vlaneseq
        %v471 = vshrl.u32 %v470, 7
        %v472 = vsub.s32 0, %v471
        %v473 = vrot.slane %v468, %v472
        %v474 = vlaneseq
        %v475 = vshrl.u32 %v474, 7
        %v476 = vsub.s32 1, %v475
        %v477 = vrot.slane %v468, %v476
        %v480 = vmul.f32 %v466, %v473
        %v481 = vmul.f32 %v467, %v477
        %v482 = vmul.f32 %v464, %v464
        %v483 = vmul.f32 %v465, %v465
        %v485 = vlaneseq
        %v486 = vshrl.u32 %v485, 7
        %v487 = vsub.s32 0, %v486
        %v488 = vrot.slane %v419, %v487
        %v489 = vlaneseq
        %v490 = vshrl.u32 %v489, 7
        %v491 = vsub.s32 1, %v490
        %v492 = vrot.slane %v419, %v491
        %v495 = vmul.f32 %v482, %v488
        %v496 = vmul.f32 %v483, %v492
        %s497 = scalar_lea.vmem %s396, 1
        %v498 = vld [vmem:[%s497] ss:$2 sm:$0x3]
        %v499 = vld [vmem:[%s396] ss:$2 sm:$0x3]
        %v500 = vsub.f32 %v498, %v499
        %v501 = vand.u32 2147483647, %v500
        %v502 = vsub.f32 0.0, %v501
        %v503 = vmul.f32 %v502, 1.442695
        %v504 = vpow.pop %v503
        %v505 = vadd.f32 %v504, 1.0
        %v506 = vlog2.pop %v505
        %v507 = vmul.f32 %v506, 0.6931472
        %v508 = vmul.f32 -0.5, %v504
        %v509 = vadd.f32 %v508, 1.0
        %v510 = vmul.f32 %v509, %v504
        %v511 = vand.u32 2147483647, %v504
        %vm512 = vcmp.lt.f32.partialorder %v511, 0.0004427343
        %v513 = vsel %vm512, %v510, %v507
        %vm514 = vcmp.gt.f32.partialorder %v419, 0.5
        %v515 = vsub.f32 0.0, %v500
        %v516 = vsel %vm514, %v515, %v500
        %v517 = vmax.f32 %v516, 0.0
        %v518 = vadd.f32 %v517, %v513
        %vm519 = vcmp.ge.f32.partialorder %v500, 0.0
        %v520 = vsel %vm519, 1.0, %v504
        %v521 = vadd.f32 %v504, 1.0
        %v522 = vrcp.pop %v521
        %v523 = vmul.f32 %v520, %v522
        %v524 = vmul.f32 %v523, %v419
        %v527 = vrot.slane %v480, 7
        %v528 = vrot.slane %v481, 7
        %v532 = vlaneseq
        %v533 = vshrl.u32 %v532, 7
        %v534 = vsub.s32 0, %v533
        %v535 = vrot.slane %v518, %v534
        %v536 = vlaneseq
        %v537 = vshrl.u32 %v536, 7
        %v538 = vsub.s32 1, %v537
        %v539 = vrot.slane %v518, %v538
        %v543 = vlaneseq
        %v544 = vshrl.u32 %v543, 7
        %v545 = vsub.s32 0, %v544
        %v546 = vrot.slane %v524, %v545
        %v547 = vlaneseq
        %v548 = vshrl.u32 %v547, 7
        %v549 = vsub.s32 1, %v548
        %v550 = vrot.slane %v524, %v549
        %v554 = vlaneseq
        %v555 = vshrl.u32 %v554, 7
        %v556 = vsub.s32 0, %v555
        %v557 = vrot.slane %v523, %v556
        %v558 = vlaneseq
        %v559 = vshrl.u32 %v558, 7
        %v560 = vsub.s32 1, %v559
        %v561 = vrot.slane %v523, %v560
        %vm564 = vcmask 1040384
        %v565 = vsel %vm564, %v495, %v527
        %v566 = vsel %vm564, %v496, %v528
        %vm567 = vcmask 1041408
        %v568 = vsel %vm567, %v565, %v535
        %v569 = vsel %vm567, %v566, %v539
        %vm570 = vcmask 1042432
        %v571 = vsel %vm570, %v568, %v546
        %v572 = vsel %vm570, %v569, %v550
        %v573 = vsel %vm429, %v571, %v557
        %v574 = vsel %vm429, %v572, %v561
        %vm575 = vcmask 1044480
        %v576 = vsel %vm575, %v573, %v488
        %v577 = vsel %vm575, %v574, %v492
        %v578 = vld [vmem:[%s411] sm:$0x3f]
        %v579 = vld [vmem:[%s411 + $0x8] sm:$0x3f]
        %v580 = vadd.f32 %v578, %v576
        %v581 = vadd.f32 %v579, %v577
        %582 = vst [vmem:[%s411] sm:$0x3f] %v580
        %583 = vst [vmem:[%s411 + $0x8] sm:$0x3f] %v581
        %p584 = scmp.lt.s32.totalorder %s26, 1
        %s585 = scalar_select %p584, %s26, 1
        %s586 = smul.addr %s585, 2
        %s587 = smul.addr %s586, 8
        %s588 = scalar_lea.vmem %s5, %s587
        // Predicated region
        $region57: #{tpu_custom_call.1} parent=39 // pred_check
          %p589 = pneg %p192
        $region58: #{tpu_custom_call.1} parent=39 // pred_check_branch
          %591 = sbr.rel (%p589) target = $region60
        $region59: #{tpu_custom_call.1} parent=39 // pred_region
          _
        $region60: #{tpu_custom_call.1} parent=39 // pred_fallthru
          _
      $region40: #{tpu_custom_call.1} parent=5 // pred_fallthru
        _
      %p592 = scmp.le.s32.totalorder 2, %s17
      // Predicated region
      $region61: #{tpu_custom_call.1} parent=5 // pred_check
        %p593 = pneg %p592
      $region62: #{tpu_custom_call.1} parent=5 // pred_check_branch
        %595 = sbr.rel (%p593) target = $region64
      $region63: #{tpu_custom_call.1} parent=5 // pred_region
        %s596 = ssub.s32 %s17, 2
        // Predicated region
        $region65: #{tpu_custom_call.1} parent=63 // pred_check
          %p597 = pneg %p198
        $region66: #{tpu_custom_call.1} parent=63 // pred_check_branch
          %599 = sbr.rel (%p597) target = $region68
        $region67: #{tpu_custom_call.1} parent=63 // pred_region
          %p600 = scmp.lt.s32.totalorder %s28, 1
          %s601 = scalar_select %p600, %s28, 1
          %s602 = smul.addr %s601, 2
          %s603 = smul.addr %s602, 8
          %s604 = scalar_lea.vmem %s5, %s603
        $region68: #{tpu_custom_call.1} parent=63 // pred_fallthru
          _
      $region64: #{tpu_custom_call.1} parent=5 // pred_fallthru
        _
    $region6: #{tpu_custom_call.1} parent=1 // loop_footer
      %s21 = sadd.s32 1, %s17
    $region7: #{tpu_custom_call.1} parent=1 // loop_footer_branch
      %16 = sbr.rel target = $region3
    $region8: #{tpu_custom_call.1} parent=1 // loop_exit
      _
    %605 = vsyncpa [#allocation3], 1
    %s606 = scalar_lea.sflag [#allocation3], 1
    %607 = vsyncpa %s606, 1
    %608 = vsyncpa [#allocation5], 1
    %s609 = scalar_lea.sflag [#allocation5], 1
    %610 = vsyncpa %s609, 1

</llo_original>
